<compile_context>
chip_gen: v5e
topology: v5e:2x2
jax: 0.10.0
libtpu: 0.0.40
codegen_flags: <defaults>
</compile_context>

<pallas_src>
import jax
import jax.numpy as jnp
from jax.experimental import pallas as pl
from jax.experimental.pallas import tpu as pltpu


def _fused_ensemble_mlp_kernel(x_ref, w1_ref, b1_ref, w2_ref, b2_ref, o_ref):
    # Single invocation; every operand is a whole VMEM-resident block.
    x = x_ref[...]                                            # (B, D)

    # Layer 1, fused over the ensemble: one MXU push -> (B, E*H), E*H on lanes.
    h = jnp.dot(x, w1_ref[...], preferred_element_type=jnp.float32)
    h = jnp.maximum(h + b1_ref[...], 0.0)                     # bias + ReLU on VPU

    # Layer 2 as a single block-diagonal matmul: (B, E*H) @ (E*H, E*O).
    y = jnp.dot(h, w2_ref[...], preferred_element_type=jnp.float32)
    o_ref[...] = (y + b2_ref[...]).astype(o_ref.dtype)        # lane-dense store


def ensemble_forward(x, w1, b1, w2, b2):
    """Vectorized ensemble MLP forward (torch.func.vmap semantics).

    x : [B, D]   shared input (vmap in_dims=None)
    w1: [E, D, H], b1: [E, H]
    w2: [E, H, O], b2: [E, O]
    returns [E, B, O]  (vmap out_dims=0)
    """
    E, D, H = w1.shape
    O = w2.shape[-1]
    B = x.shape[0]

    # ---- wrapper-side layout plumbing (negligible cost, done once in XLA) ----
    # Fuse layer 1 across the ensemble: [E, D, H] -> [D, E*H] (e-major columns).
    w1_fused = jnp.transpose(w1, (1, 0, 2)).reshape(D, E * H)
    b1_fused = b1.reshape(1, E * H)
    # Layer 2 as a block-diagonal [E*H, E*O]; off-diagonal zeros cost nothing
    # at <1% MXU utilization and make the output lane-contiguous.
    eye = jnp.eye(E, dtype=w2.dtype)
    w2_bd = (w2[:, :, None, :] * eye[:, None, :, None]).reshape(E * H, E * O)
    b2_fused = b2.reshape(1, E * O)

    y = pl.pallas_call(
        _fused_ensemble_mlp_kernel,
        out_shape=jax.ShapeDtypeStruct((B, E * O), jnp.float32),
        in_specs=[
            pl.BlockSpec(memory_space=pltpu.MemorySpace.VMEM),  # x        (B, D)
            pl.BlockSpec(memory_space=pltpu.MemorySpace.VMEM),  # W1 fused (D, E*H)
            pl.BlockSpec(memory_space=pltpu.MemorySpace.VMEM),  # b1 fused (1, E*H)
            pl.BlockSpec(memory_space=pltpu.MemorySpace.VMEM),  # W2 bdiag (E*H, E*O)
            pl.BlockSpec(memory_space=pltpu.MemorySpace.VMEM),  # b2 fused (1, E*O)
        ],
        out_specs=pl.BlockSpec(memory_space=pltpu.MemorySpace.VMEM),
    )(x, w1_fused, b1_fused, w2_bd, b2_fused)

    # Lane-dense [B, E*O] out of the kernel; recover vmap layout [E, B, O].
    return jnp.transpose(y.reshape(B, E, O), (1, 0, 2))


def ensemble_forward_ref(x, w1, b1, w2, b2):
    # Pure-JAX reference (equivalent of torch.func.vmap over stacked params).
    h = jnp.maximum(jnp.einsum("bd,edh->ebh", x, w1) + b1[:, None, :], 0.0)
    return jnp.einsum("ebh,eho->ebo", h, w2) + b2[:, None, :]


if __name__ == "__main__":
    # Small deterministic setup: ensemble of E=4 MLPs, batch=8, in=32, hid=32, out=8.
    # (E*H = 128 exactly fills the lane axis after the ensemble fusion.)
    E, B, D, H, O = 4, 8, 32, 32, 8
    key = jax.random.PRNGKey(0)
    kx, k1, k2, k3, k4 = jax.random.split(key, 5)

    x = jax.random.normal(kx, (B, D), dtype=jnp.float32)
    w1 = jax.random.normal(k1, (E, D, H), dtype=jnp.float32) * 0.1
    b1 = jax.random.normal(k2, (E, H), dtype=jnp.float32) * 0.1
    w2 = jax.random.normal(k3, (E, H, O), dtype=jnp.float32) * 0.1
    b2 = jax.random.normal(k4, (E, O), dtype=jnp.float32) * 0.1

    out = ensemble_forward(x, w1, b1, w2, b2)
    jax.block_until_ready(out)

    ref = ensemble_forward_ref(x, w1, b1, w2, b2)
    assert out.shape == (E, B, O), out.shape
    assert jnp.allclose(out, ref, atol=1e-5, rtol=1e-5), "mismatch vs reference"

    print("KERNEL_OK")
</pallas_src>

<mosaic_0001>
module attributes {stable_mosaic.version = 11 : i64} {
  func.func @_fused_ensemble_mlp_kernel(%arg0: memref<8x32xf32, #tpu.memory_space<vmem>>, %arg1: memref<32x128xf32, #tpu.memory_space<vmem>>, %arg2: memref<1x128xf32, #tpu.memory_space<vmem>>, %arg3: memref<128x32xf32, #tpu.memory_space<vmem>>, %arg4: memref<1x32xf32, #tpu.memory_space<vmem>>, %arg5: memref<8x32xf32, #tpu.memory_space<vmem>>) attributes {dimension_semantics = [], scalar_prefetch = 0 : i64, scratch_operands = 0 : i64, tpu.core_type = #tpu.core_type<tc>} {
    %c0 = arith.constant 0 : index
    %c0_0 = arith.constant 0 : index
    %0 = vector.load %arg0[%c0, %c0_0] : memref<8x32xf32, #tpu.memory_space<vmem>>, vector<8x32xf32>
    %c0_1 = arith.constant 0 : index
    %c0_2 = arith.constant 0 : index
    %1 = vector.load %arg1[%c0_1, %c0_2] : memref<32x128xf32, #tpu.memory_space<vmem>>, vector<32x128xf32>
    %cst = arith.constant dense<0.000000e+00> : vector<8x128xf32>
    %2 = tpu.matmul %0, %1, %cst {dimension_numbers = #tpu.dot_dimension_numbers<[1], [0], [0], [1], [0, 0, 1, 1], [], []>} : vector<8x32xf32>, vector<32x128xf32>, vector<8x128xf32> -> vector<8x128xf32>
    %c0_3 = arith.constant 0 : index
    %c0_4 = arith.constant 0 : index
    %3 = vector.load %arg2[%c0_3, %c0_4] : memref<1x128xf32, #tpu.memory_space<vmem>>, vector<1x128xf32>
    %4 = vector.broadcast %3 : vector<1x128xf32> to vector<8x128xf32>
    %5 = arith.addf %2, %4 : vector<8x128xf32>
    %cst_5 = arith.constant 0.000000e+00 : f32
    %6 = vector.broadcast %cst_5 : f32 to vector<8x128xf32>
    %7 = arith.maximumf %5, %6 : vector<8x128xf32>
    %c0_6 = arith.constant 0 : index
    %c0_7 = arith.constant 0 : index
    %8 = vector.load %arg3[%c0_6, %c0_7] : memref<128x32xf32, #tpu.memory_space<vmem>>, vector<128x32xf32>
    %cst_8 = arith.constant dense<0.000000e+00> : vector<8x32xf32>
    %9 = tpu.matmul %7, %8, %cst_8 {dimension_numbers = #tpu.dot_dimension_numbers<[1], [0], [0], [1], [0, 0, 1, 1], [], []>} : vector<8x128xf32>, vector<128x32xf32>, vector<8x32xf32> -> vector<8x32xf32>
    %c0_9 = arith.constant 0 : index
    %c0_10 = arith.constant 0 : index
    %10 = vector.load %arg4[%c0_9, %c0_10] : memref<1x32xf32, #tpu.memory_space<vmem>>, vector<1x32xf32>
    %11 = vector.broadcast %10 : vector<1x32xf32> to vector<8x32xf32>
    %12 = arith.addf %9, %11 : vector<8x32xf32>
    %c0_11 = arith.constant 0 : index
    %c0_12 = arith.constant 0 : index
    %13 = vector.load %arg5[%c0_11, %c0_12] : memref<8x32xf32, #tpu.memory_space<vmem>>, vector<8x32xf32>
    tpu.vector_store %arg5[%c0_11, %c0_12], %12 {strides = array<i32>} : memref<8x32xf32, #tpu.memory_space<vmem>>, vector<8x32xf32>,
    return
  }
}

</mosaic_0001>

<llo_original>
// kernel: tpu_custom_call.1
$region0: #{tpu_custom_call.1}
  #allocation0 [shape = 'u32[]', space=smem, size = 0x4, offset = 0x4, fixed_abs, tag = 'smem constant byte address 0x4 - core index']
  #allocation1 [shape = 'u32[72,128]{1,0:T(1,128)}', space=vmem, size = 0x9000, scoped, tag = 'internal scratch']
  %s0 = inlined_call_operand.vmem [shape: f32[8,32], index: 0, kind: input, shape index: {}]
  %s1 = inlined_call_operand.vmem [shape: f32[32,128], index: 1, kind: input, shape index: {}]
  %s2 = inlined_call_operand.vmem [shape: f32[1,128], index: 2, kind: input, shape index: {}]
  %s3 = inlined_call_operand.vmem [shape: f32[128,32], index: 3, kind: input, shape index: {}]
  %s4 = inlined_call_operand.vmem [shape: f32[1,32], index: 4, kind: input, shape index: {}]
  %s5 = inlined_call_operand.hbm [shape: f32[8,32], index: 5, kind: output, shape index: {}]
  %s6 = sld [smem:[#allocation0]]
  $region30: #{tpu_custom_call.1} parent=0
    _
  %s8 = ssub.s32 1, %s6
  %s9 = scalar_select 0, %s8, %s6
  $region1: #{tpu_custom_call.1} parent=0
    #allocation2 [shape = 'u8[4096]{0}', space=vmem, size = 0x1000, scoped, tag = 'output window, operand 0, single buffered']
    #allocation3 [shape = 's32[1]{0}', space=sflag, size = 0x4, scoped, tag = 'scoped memory for tpu_custom_call.1']
    %10 = vsyncpa [#allocation3], 0
    // Predicated region
    $region2: #{tpu_custom_call.1} parent=1 // pred_check
      _
    $region3: #{tpu_custom_call.1} parent=1 // pred_check_branch
      %12 = sbr.rel (0) target = $region5
    $region4: #{tpu_custom_call.1} parent=1 // pred_region
      _
    $region5: #{tpu_custom_call.1} parent=1 // pred_fallthru
      _
    // Predicated region
    $region6: #{tpu_custom_call.1} parent=1 // pred_check
      _
    $region7: #{tpu_custom_call.1} parent=1 // pred_check_branch
      %14 = sbr.rel (0) target = $region9
    $region8: #{tpu_custom_call.1} parent=1 // pred_region
      _
    $region9: #{tpu_custom_call.1} parent=1 // pred_fallthru
      _
    // Predicated region
    $region10: #{tpu_custom_call.1} parent=1 // pred_check
      _
    $region11: #{tpu_custom_call.1} parent=1 // pred_check_branch
      %16 = sbr.rel (0) target = $region13
    $region12: #{tpu_custom_call.1} parent=1 // pred_region
      _
    $region13: #{tpu_custom_call.1} parent=1 // pred_fallthru
      _
    // Predicated region
    $region14: #{tpu_custom_call.1} parent=1 // pred_check
      _
    $region15: #{tpu_custom_call.1} parent=1 // pred_check_branch
      %18 = sbr.rel (0) target = $region17
    $region16: #{tpu_custom_call.1} parent=1 // pred_region
      _
    $region17: #{tpu_custom_call.1} parent=1 // pred_fallthru
      _
    // Predicated region
    $region18: #{tpu_custom_call.1} parent=1 // pred_check
      _
    $region19: #{tpu_custom_call.1} parent=1 // pred_check_branch
      %20 = sbr.rel (0) target = $region21
    $region20: #{tpu_custom_call.1} parent=1 // pred_region
      _
    $region21: #{tpu_custom_call.1} parent=1 // pred_fallthru
      _
    %v21 = vld [vmem:[%s0] sm:$0xff]
    %v22 = vld [vmem:[%s1] sm:$0xff]
    %v23 = vld [vmem:[%s1 + $0x8] sm:$0xff]
    %v24 = vld [vmem:[%s1 + $0x10] sm:$0xff]
    %v25 = vld [vmem:[%s1 + $0x18] sm:$0xff]
    %v26 = vld [vmem:[%s2] sm:$0x1]
    %v28 = vperm.slane %v26, 0
    %vm30 = vcmask 261120
    %v32 = vsel %vm30, %v21, 0
    %34 = vmatpush.msra.mxu0 0.0
    %35 = vmatpush.msra.mxu0 0.0
    %36 = vmatpush.msra.mxu0 0.0
    %37 = vmatpush.msra.mxu0 0.0
    %38 = vmatpush.msra.mxu0 0.0
    %39 = vmatpush.msra.mxu0 0.0
    %40 = vmatpush.msra.mxu0 0.0
    %41 = vmatpush.msra.mxu0 0.0
    %42 = vmatpush.msra.mxu0 0.0
    %43 = vmatpush.msra.mxu0 0.0
    %44 = vmatpush.msra.mxu0 0.0
    %45 = vmatpush.msra.mxu0 0.0
    %46 = vmatpush.msra.mxu0 %v25
    %47 = vmatpush.msra.mxu0 %v24
    %48 = vmatpush.msra.mxu0 %v23
    %49 = vmatpush.msra.mxu0 %v22
    %50 = vmatmul.f32.gmra.mxu0 %v32
    %v51 = vpop.f32.mrf.mxu0
    %v52 = vadd.f32 %v28, %v51
    %53 = vdwg.mxu0
    %v54 = vmax.f32 %v52, 0.0
    %v55 = vld [vmem:[%s3] sm:$0xff]
    %v56 = vld [vmem:[%s3 + $0x8] sm:$0xff]
    %v57 = vld [vmem:[%s3 + $0x10] sm:$0xff]
    %v58 = vld [vmem:[%s3 + $0x18] sm:$0xff]
    %v59 = vld [vmem:[%s3 + $0x20] sm:$0xff]
    %v60 = vld [vmem:[%s3 + $0x28] sm:$0xff]
    %v61 = vld [vmem:[%s3 + $0x30] sm:$0xff]
    %v62 = vld [vmem:[%s3 + $0x38] sm:$0xff]
    %v63 = vld [vmem:[%s3 + $0x40] sm:$0xff]
    %v64 = vld [vmem:[%s3 + $0x48] sm:$0xff]
    %v65 = vld [vmem:[%s3 + $0x50] sm:$0xff]
    %v66 = vld [vmem:[%s3 + $0x58] sm:$0xff]
    %v67 = vld [vmem:[%s3 + $0x60] sm:$0xff]
    %v68 = vld [vmem:[%s3 + $0x68] sm:$0xff]
    %v69 = vld [vmem:[%s3 + $0x70] sm:$0xff]
    %v70 = vld [vmem:[%s3 + $0x78] sm:$0xff]
    %v71 = vld [vmem:[%s4] sm:$0x1]
    %v73 = vperm.slane %v71, 0
    %75 = vmatpush.msra.mxu0 %v70
    %76 = vmatpush.msra.mxu0 %v69
    %77 = vmatpush.msra.mxu0 %v68
    %78 = vmatpush.msra.mxu0 %v67
    %79 = vmatpush.msra.mxu0 %v66
    %80 = vmatpush.msra.mxu0 %v65
    %81 = vmatpush.msra.mxu0 %v64
    %82 = vmatpush.msra.mxu0 %v63
    %83 = vmatpush.msra.mxu0 %v62
    %84 = vmatpush.msra.mxu0 %v61
    %85 = vmatpush.msra.mxu0 %v60
    %86 = vmatpush.msra.mxu0 %v59
    %87 = vmatpush.msra.mxu0 %v58
    %88 = vmatpush.msra.mxu0 %v57
    %89 = vmatpush.msra.mxu0 %v56
    %90 = vmatpush.msra.mxu0 %v55
    %91 = vmatmul.f32.gmra.mxu0 %v54
    %v92 = vpop.f32.mrf.mxu0
    %v93 = vadd.f32 %v73, %v92
    %94 = vdwg.mxu0
    %95 = vst.msk [vmem:[#allocation2] sm:$0xff] %vm30, %v93
    // Predicated region
    $region22: #{tpu_custom_call.1} parent=1 // pred_check
      _
    $region23: #{tpu_custom_call.1} parent=1 // pred_check_branch
      %97 = sbr.rel (0) target = $region25
    $region24: #{tpu_custom_call.1} parent=1 // pred_region
      %99 = vsyncadd [#allocation3], 0
      %s101 = sshll.u32 [#allocation2], 4
      %s102 = int_to_ptr.vmem [resolvable:$true] %s101
      %s103 = sshll.u32 %s5, 4
      %s104 = int_to_ptr.hbm [resolvable:$true] %s103
      %106 = dma.vmem_to_hbm [thread:$0]  %s102, 128, %s104, [#allocation3]
    $region25: #{tpu_custom_call.1} parent=1 // pred_fallthru
      _
    // Predicated region
    $region26: #{tpu_custom_call.1} parent=1 // pred_check
      _
    $region27: #{tpu_custom_call.1} parent=1 // pred_check_branch
      %108 = sbr.rel (0) target = $region29
    $region28: #{tpu_custom_call.1} parent=1 // pred_region
      %110 = dma.done [#allocation3], 128
    $region29: #{tpu_custom_call.1} parent=1 // pred_fallthru
      _
    %111 = vsyncpa [#allocation3], 1

</llo_original>
